<compile_context>
chip_gen: v5e
topology: v5e:2x2
jax: 0.10.0
libtpu: 0.0.40
codegen_flags: <defaults>
</compile_context>

<pallas_src>
import math

import jax
import jax.numpy as jnp
from jax.experimental import pallas as pl
from jax.experimental.pallas import tpu as pltpu

# Small, module-consistent shapes.
B = 2        # batch
L = 16       # sequence length
D = 32       # hidden (embed) dim
H = 4        # attention heads
HD = D // H  # head dim
VOCAB = 32   # synthetic vocab size


def attn_map_kernel(x_ref, wqk_ref, twod_ref, o_ref):
    """Whole-problem attention-map computation (single grid step).

    x_ref:    [B*L, D]     token embeddings, batch folded into rows (VMEM)
    wqk_ref:  [D, 2*D]     fused [Wq | Wk] projection weight
    twod_ref: [B, L, L]    2D pairwise additive bias
    o_ref:    [H, B, L, L] attention probabilities (head-major; transposed
                           to [B, H, L, L] in the wrapper)
    """
    x = x_ref[...]                                               # [B*L, D]
    # Fused Q/K projection: one MXU push over all batch rows.
    qk = jnp.dot(x, wqk_ref[...], preferred_element_type=jnp.float32)  # [B*L, 2D]

    scale = jnp.float32(1.0 / math.sqrt(HD))
    q = qk[:, :D] * scale                                        # scale applied once
    k = qk[:, D:]
    # Cheap sublane-split reshapes (rows -> (batch, seq)); no lane movement.
    q3 = q.reshape(B, L, D)
    k3 = k.reshape(B, L, D)

    bias = twod_ref[...]                                         # [B, L, L]

    # Static unrolled head loop (H=4). Each iteration is one batched,
    # transpose-free contraction over the head dim (no kh.T / XLU relayout).
    for h in range(H):
        qh = q3[:, :, h * HD:(h + 1) * HD]                       # [B, L, HD]
        kh = k3[:, :, h * HD:(h + 1) * HD]                       # [B, L, HD]
        s = jnp.einsum("bqd,bkd->bqk", qh, kh,
                       preferred_element_type=jnp.float32) + bias  # [B, L, L]
        # Numerically stable softmax over the key axis.
        m = jnp.max(s, axis=-1, keepdims=True)
        p = jnp.exp(s - m)
        denom = jnp.sum(p, axis=-1, keepdims=True)
        # EUP approximate reciprocal + one Newton step (~f32 accurate).
        r = pl.reciprocal(denom, approx=True)
        r = r * (2.0 - denom * r)
        o_ref[h] = p * r


def ernie_rna_attn_map(x_emb, wq, wk, twod):
    """Wrapper: fuse Q/K weights, run a single-step pallas_call, return
    the attention map as [B, H, L, L]."""
    x2d = x_emb.reshape(B * L, D)                 # fold batch into rows
    w_qk = jnp.concatenate([wq, wk], axis=1)      # [D, 2*D] fused projection

    out = pl.pallas_call(
        attn_map_kernel,
        out_shape=jax.ShapeDtypeStruct((H, B, L, L), jnp.float32),
        grid_spec=pltpu.PrefetchScalarGridSpec(
            num_scalar_prefetch=0,
            grid=(1,),  # single step: everything resident, overhead paid once
            in_specs=[
                pl.BlockSpec((B * L, D), lambda i: (0, 0)),       # x (folded)
                pl.BlockSpec((D, 2 * D), lambda i: (0, 0)),       # fused Wqk
                pl.BlockSpec((B, L, L), lambda i: (0, 0, 0)),     # twod bias
            ],
            out_specs=pl.BlockSpec((H, B, L, L), lambda i: (0, 0, 0, 0)),
        ),
        compiler_params=pltpu.CompilerParams(
            dimension_semantics=("arbitrary",)),
    )(x2d, w_qk, twod)
    return jnp.transpose(out, (1, 0, 2, 3))       # [B, H, L, L]


def reference(x_emb, wq, wk, twod):
    """Pure-JAX reference for correctness checking."""
    q = x_emb @ wq                                    # [B, L, D]
    k = x_emb @ wk                                    # [B, L, D]
    q = q.reshape(B, L, H, HD).transpose(0, 2, 1, 3)  # [B, H, L, HD]
    k = k.reshape(B, L, H, HD).transpose(0, 2, 1, 3)  # [B, H, L, HD]
    s = jnp.einsum("bhqd,bhkd->bhqk", q, k) / (HD ** 0.5)
    s = s + twod[:, None, :, :]
    return jax.nn.softmax(s, axis=-1)


if __name__ == "__main__":
    key = jax.random.PRNGKey(0)
    k_tok, k_emb, k_wq, k_wk, k_2d = jax.random.split(key, 5)

    # Deterministic synthetic parameters / inputs.
    tokens = jax.random.randint(k_tok, (B, L), 0, VOCAB, dtype=jnp.int32)
    emb_table = jax.random.normal(k_emb, (VOCAB, D), dtype=jnp.float32) * 0.02
    wq = jax.random.normal(k_wq, (D, D), dtype=jnp.float32) * (1.0 / D ** 0.5)
    wk = jax.random.normal(k_wk, (D, D), dtype=jnp.float32) * (1.0 / D ** 0.5)
    twod = jax.random.normal(k_2d, (B, L, L), dtype=jnp.float32)

    # Glue: embedding lookup stays in plain JAX.
    x_emb = jnp.take(emb_table, tokens, axis=0)  # [B, L, D]

    attn = ernie_rna_attn_map(x_emb, wq, wk, twod)
    attn = jax.block_until_ready(attn)

    ref = reference(x_emb, wq, wk, twod)
    assert attn.shape == (B, H, L, L)
    assert jnp.allclose(attn, ref, atol=1e-5, rtol=1e-5)

    print("KERNEL_OK")
</pallas_src>

<mosaic_0001>
module attributes {stable_mosaic.version = 11 : i64} {
  func.func @attn_map_kernel(%arg0: i32, %arg1: memref<32x32xf32, #tpu.memory_space<vmem>>, %arg2: memref<32x64xf32, #tpu.memory_space<vmem>>, %arg3: memref<2x16x16xf32, #tpu.memory_space<vmem>>, %arg4: memref<4x2x16x16xf32, #tpu.memory_space<vmem>>) attributes {dimension_semantics = [#tpu.dimension_semantics<arbitrary>], iteration_bounds = array<i64: 1>, scalar_prefetch = 0 : i64, scratch_operands = 0 : i64, tpu.core_type = #tpu.core_type<tc>, window_params = [{pipeline_mode = #tpu.pipeline_mode<synchronous>, transform_indices = @transform_0, window_bounds = array<i64: 32, 32>}, {pipeline_mode = #tpu.pipeline_mode<synchronous>, transform_indices = @transform_1, window_bounds = array<i64: 32, 64>}, {pipeline_mode = #tpu.pipeline_mode<synchronous>, transform_indices = @transform_2, window_bounds = array<i64: 2, 16, 16>}, {pipeline_mode = #tpu.pipeline_mode<synchronous>, transform_indices = @transform_3, window_bounds = array<i64: 4, 2, 16, 16>}]} {
    %c0 = arith.constant 0 : index
    %c0_0 = arith.constant 0 : index
    %0 = vector.load %arg1[%c0, %c0_0] : memref<32x32xf32, #tpu.memory_space<vmem>>, vector<32x32xf32>
    %c0_1 = arith.constant 0 : index
    %c0_2 = arith.constant 0 : index
    %1 = vector.load %arg2[%c0_1, %c0_2] : memref<32x64xf32, #tpu.memory_space<vmem>>, vector<32x64xf32>
    %cst = arith.constant dense<0.000000e+00> : vector<32x64xf32>
    %2 = tpu.matmul %0, %1, %cst {dimension_numbers = #tpu.dot_dimension_numbers<[1], [0], [0], [1], [0, 0, 1, 1], [], []>} : vector<32x32xf32>, vector<32x64xf32>, vector<32x64xf32> -> vector<32x64xf32>
    %3 = vector.extract_strided_slice %2 {offsets = [0, 0], sizes = [32, 32], strides = [1, 1]} : vector<32x64xf32> to vector<32x32xf32>
    %cst_3 = arith.constant 0.353553385 : f32
    %4 = vector.broadcast %cst_3 : f32 to vector<32x32xf32>
    %5 = arith.mulf %3, %4 : vector<32x32xf32>
    %6 = vector.extract_strided_slice %2 {offsets = [0, 32], sizes = [32, 32], strides = [1, 1]} : vector<32x64xf32> to vector<32x32xf32>
    %7 = vector.shape_cast %5 : vector<32x32xf32> to vector<2x16x32xf32>
    %8 = vector.shape_cast %6 : vector<32x32xf32> to vector<2x16x32xf32>
    %c0_4 = arith.constant 0 : index
    %c0_5 = arith.constant 0 : index
    %c0_6 = arith.constant 0 : index
    %9 = vector.load %arg3[%c0_4, %c0_5, %c0_6] : memref<2x16x16xf32, #tpu.memory_space<vmem>>, vector<2x16x16xf32>
    %10 = vector.extract_strided_slice %7 {offsets = [0, 0, 0], sizes = [2, 16, 8], strides = [1, 1, 1]} : vector<2x16x32xf32> to vector<2x16x8xf32>
    %11 = vector.extract_strided_slice %8 {offsets = [0, 0, 0], sizes = [2, 16, 8], strides = [1, 1, 1]} : vector<2x16x32xf32> to vector<2x16x8xf32>
    "tpu.trace_start"() <{level = 10 : i32, message = "bqd,bkd->bqk"}> : () -> ()
    %cst_7 = arith.constant dense<0.000000e+00> : vector<2x16x16xf32>
    %12 = tpu.matmul %10, %11, %cst_7 {dimension_numbers = #tpu.dot_dimension_numbers<[2], [2], [1], [1], [0, 0, 0, 1, 1, 1], [0], [0]>} : vector<2x16x8xf32>, vector<2x16x8xf32>, vector<2x16x16xf32> -> vector<2x16x16xf32>
    "tpu.trace_stop"() : () -> ()
    %13 = arith.addf %12, %9 : vector<2x16x16xf32>
    %cst_8 = arith.constant dense<0xFF800000> : vector<2x16xf32>
    %14 = vector.multi_reduction <maximumf>, %13, %cst_8 [2] : vector<2x16x16xf32> to vector<2x16xf32>
    %15 = vector.shape_cast %14 : vector<2x16xf32> to vector<2x16x1xf32>
    %16 = vector.broadcast %15 : vector<2x16x1xf32> to vector<2x16x16xf32>
    %17 = arith.subf %13, %16 : vector<2x16x16xf32>
    %18 = math.exp %17 : vector<2x16x16xf32>
    %cst_9 = arith.constant dense<0.000000e+00> : vector<2x16xf32>
    %19 = vector.multi_reduction <add>, %18, %cst_9 [2] : vector<2x16x16xf32> to vector<2x16xf32>
    %20 = vector.shape_cast %19 : vector<2x16xf32> to vector<2x16x1xf32>
    %21 = tpu.reciprocal %20 {approx = true} : vector<2x16x1xf32> -> vector<2x16x1xf32>
    %22 = arith.mulf %20, %21 : vector<2x16x1xf32>
    %cst_10 = arith.constant 2.000000e+00 : f32
    %23 = vector.broadcast %cst_10 : f32 to vector<2x16x1xf32>
    %24 = arith.subf %23, %22 : vector<2x16x1xf32>
    %25 = arith.mulf %21, %24 : vector<2x16x1xf32>
    %26 = vector.broadcast %25 : vector<2x16x1xf32> to vector<2x16x16xf32>
    %27 = arith.mulf %18, %26 : vector<2x16x16xf32>
    %c0_11 = arith.constant 0 : index
    %c0_12 = arith.constant 0 : index
    %c0_13 = arith.constant 0 : index
    %c0_14 = arith.constant 0 : index
    %28 = vector.load %arg4[%c0_11, %c0_12, %c0_13, %c0_14] : memref<4x2x16x16xf32, #tpu.memory_space<vmem>>, vector<1x2x16x16xf32>
    %29 = vector.shape_cast %28 : vector<1x2x16x16xf32> to vector<2x16x16xf32>
    %30 = vector.shape_cast %27 : vector<2x16x16xf32> to vector<1x2x16x16xf32>
    tpu.vector_store %arg4[%c0_11, %c0_12, %c0_13, %c0_14], %30 {strides = array<i32>} : memref<4x2x16x16xf32, #tpu.memory_space<vmem>>, vector<1x2x16x16xf32>,
    %31 = vector.extract_strided_slice %7 {offsets = [0, 0, 8], sizes = [2, 16, 8], strides = [1, 1, 1]} : vector<2x16x32xf32> to vector<2x16x8xf32>
    %32 = vector.extract_strided_slice %8 {offsets = [0, 0, 8], sizes = [2, 16, 8], strides = [1, 1, 1]} : vector<2x16x32xf32> to vector<2x16x8xf32>
    "tpu.trace_start"() <{level = 10 : i32, message = "bqd,bkd->bqk"}> : () -> ()
    %cst_15 = arith.constant dense<0.000000e+00> : vector<2x16x16xf32>
    %33 = tpu.matmul %31, %32, %cst_15 {dimension_numbers = #tpu.dot_dimension_numbers<[2], [2], [1], [1], [0, 0, 0, 1, 1, 1], [0], [0]>} : vector<2x16x8xf32>, vector<2x16x8xf32>, vector<2x16x16xf32> -> vector<2x16x16xf32>
    "tpu.trace_stop"() : () -> ()
    %34 = arith.addf %33, %9 : vector<2x16x16xf32>
    %cst_16 = arith.constant dense<0xFF800000> : vector<2x16xf32>
    %35 = vector.multi_reduction <maximumf>, %34, %cst_16 [2] : vector<2x16x16xf32> to vector<2x16xf32>
    %36 = vector.shape_cast %35 : vector<2x16xf32> to vector<2x16x1xf32>
    %37 = vector.broadcast %36 : vector<2x16x1xf32> to vector<2x16x16xf32>
    %38 = arith.subf %34, %37 : vector<2x16x16xf32>
    %39 = math.exp %38 : vector<2x16x16xf32>
    %cst_17 = arith.constant dense<0.000000e+00> : vector<2x16xf32>
    %40 = vector.multi_reduction <add>, %39, %cst_17 [2] : vector<2x16x16xf32> to vector<2x16xf32>
    %41 = vector.shape_cast %40 : vector<2x16xf32> to vector<2x16x1xf32>
    %42 = tpu.reciprocal %41 {approx = true} : vector<2x16x1xf32> -> vector<2x16x1xf32>
    %43 = arith.mulf %41, %42 : vector<2x16x1xf32>
    %cst_18 = arith.constant 2.000000e+00 : f32
    %44 = vector.broadcast %cst_18 : f32 to vector<2x16x1xf32>
    %45 = arith.subf %44, %43 : vector<2x16x1xf32>
    %46 = arith.mulf %42, %45 : vector<2x16x1xf32>
    %47 = vector.broadcast %46 : vector<2x16x1xf32> to vector<2x16x16xf32>
    %48 = arith.mulf %39, %47 : vector<2x16x16xf32>
    %c1 = arith.constant 1 : index
    %c0_19 = arith.constant 0 : index
    %c0_20 = arith.constant 0 : index
    %c0_21 = arith.constant 0 : index
    %49 = vector.load %arg4[%c1, %c0_19, %c0_20, %c0_21] : memref<4x2x16x16xf32, #tpu.memory_space<vmem>>, vector<1x2x16x16xf32>
    %50 = vector.shape_cast %49 : vector<1x2x16x16xf32> to vector<2x16x16xf32>
    %51 = vector.shape_cast %48 : vector<2x16x16xf32> to vector<1x2x16x16xf32>
    tpu.vector_store %arg4[%c1, %c0_19, %c0_20, %c0_21], %51 {strides = array<i32>} : memref<4x2x16x16xf32, #tpu.memory_space<vmem>>, vector<1x2x16x16xf32>,
    %52 = vector.extract_strided_slice %7 {offsets = [0, 0, 16], sizes = [2, 16, 8], strides = [1, 1, 1]} : vector<2x16x32xf32> to vector<2x16x8xf32>
    %53 = vector.extract_strided_slice %8 {offsets = [0, 0, 16], sizes = [2, 16, 8], strides = [1, 1, 1]} : vector<2x16x32xf32> to vector<2x16x8xf32>
    "tpu.trace_start"() <{level = 10 : i32, message = "bqd,bkd->bqk"}> : () -> ()
    %cst_22 = arith.constant dense<0.000000e+00> : vector<2x16x16xf32>
    %54 = tpu.matmul %52, %53, %cst_22 {dimension_numbers = #tpu.dot_dimension_numbers<[2], [2], [1], [1], [0, 0, 0, 1, 1, 1], [0], [0]>} : vector<2x16x8xf32>, vector<2x16x8xf32>, vector<2x16x16xf32> -> vector<2x16x16xf32>
    "tpu.trace_stop"() : () -> ()
    %55 = arith.addf %54, %9 : vector<2x16x16xf32>
    %cst_23 = arith.constant dense<0xFF800000> : vector<2x16xf32>
    %56 = vector.multi_reduction <maximumf>, %55, %cst_23 [2] : vector<2x16x16xf32> to vector<2x16xf32>
    %57 = vector.shape_cast %56 : vector<2x16xf32> to vector<2x16x1xf32>
    %58 = vector.broadcast %57 : vector<2x16x1xf32> to vector<2x16x16xf32>
    %59 = arith.subf %55, %58 : vector<2x16x16xf32>
    %60 = math.exp %59 : vector<2x16x16xf32>
    %cst_24 = arith.constant dense<0.000000e+00> : vector<2x16xf32>
    %61 = vector.multi_reduction <add>, %60, %cst_24 [2] : vector<2x16x16xf32> to vector<2x16xf32>
    %62 = vector.shape_cast %61 : vector<2x16xf32> to vector<2x16x1xf32>
    %63 = tpu.reciprocal %62 {approx = true} : vector<2x16x1xf32> -> vector<2x16x1xf32>
    %64 = arith.mulf %62, %63 : vector<2x16x1xf32>
    %cst_25 = arith.constant 2.000000e+00 : f32
    %65 = vector.broadcast %cst_25 : f32 to vector<2x16x1xf32>
    %66 = arith.subf %65, %64 : vector<2x16x1xf32>
    %67 = arith.mulf %63, %66 : vector<2x16x1xf32>
    %68 = vector.broadcast %67 : vector<2x16x1xf32> to vector<2x16x16xf32>
    %69 = arith.mulf %60, %68 : vector<2x16x16xf32>
    %c2 = arith.constant 2 : index
    %c0_26 = arith.constant 0 : index
    %c0_27 = arith.constant 0 : index
    %c0_28 = arith.constant 0 : index
    %70 = vector.load %arg4[%c2, %c0_26, %c0_27, %c0_28] : memref<4x2x16x16xf32, #tpu.memory_space<vmem>>, vector<1x2x16x16xf32>
    %71 = vector.shape_cast %70 : vector<1x2x16x16xf32> to vector<2x16x16xf32>
    %72 = vector.shape_cast %69 : vector<2x16x16xf32> to vector<1x2x16x16xf32>
    tpu.vector_store %arg4[%c2, %c0_26, %c0_27, %c0_28], %72 {strides = array<i32>} : memref<4x2x16x16xf32, #tpu.memory_space<vmem>>, vector<1x2x16x16xf32>,
    %73 = vector.extract_strided_slice %7 {offsets = [0, 0, 24], sizes = [2, 16, 8], strides = [1, 1, 1]} : vector<2x16x32xf32> to vector<2x16x8xf32>
    %74 = vector.extract_strided_slice %8 {offsets = [0, 0, 24], sizes = [2, 16, 8], strides = [1, 1, 1]} : vector<2x16x32xf32> to vector<2x16x8xf32>
    "tpu.trace_start"() <{level = 10 : i32, message = "bqd,bkd->bqk"}> : () -> ()
    %cst_29 = arith.constant dense<0.000000e+00> : vector<2x16x16xf32>
    %75 = tpu.matmul %73, %74, %cst_29 {dimension_numbers = #tpu.dot_dimension_numbers<[2], [2], [1], [1], [0, 0, 0, 1, 1, 1], [0], [0]>} : vector<2x16x8xf32>, vector<2x16x8xf32>, vector<2x16x16xf32> -> vector<2x16x16xf32>
    "tpu.trace_stop"() : () -> ()
    %76 = arith.addf %75, %9 : vector<2x16x16xf32>
    %cst_30 = arith.constant dense<0xFF800000> : vector<2x16xf32>
    %77 = vector.multi_reduction <maximumf>, %76, %cst_30 [2] : vector<2x16x16xf32> to vector<2x16xf32>
    %78 = vector.shape_cast %77 : vector<2x16xf32> to vector<2x16x1xf32>
    %79 = vector.broadcast %78 : vector<2x16x1xf32> to vector<2x16x16xf32>
    %80 = arith.subf %76, %79 : vector<2x16x16xf32>
    %81 = math.exp %80 : vector<2x16x16xf32>
    %cst_31 = arith.constant dense<0.000000e+00> : vector<2x16xf32>
    %82 = vector.multi_reduction <add>, %81, %cst_31 [2] : vector<2x16x16xf32> to vector<2x16xf32>
    %83 = vector.shape_cast %82 : vector<2x16xf32> to vector<2x16x1xf32>
    %84 = tpu.reciprocal %83 {approx = true} : vector<2x16x1xf32> -> vector<2x16x1xf32>
    %85 = arith.mulf %83, %84 : vector<2x16x1xf32>
    %cst_32 = arith.constant 2.000000e+00 : f32
    %86 = vector.broadcast %cst_32 : f32 to vector<2x16x1xf32>
    %87 = arith.subf %86, %85 : vector<2x16x1xf32>
    %88 = arith.mulf %84, %87 : vector<2x16x1xf32>
    %89 = vector.broadcast %88 : vector<2x16x1xf32> to vector<2x16x16xf32>
    %90 = arith.mulf %81, %89 : vector<2x16x16xf32>
    %c3 = arith.constant 3 : index
    %c0_33 = arith.constant 0 : index
    %c0_34 = arith.constant 0 : index
    %c0_35 = arith.constant 0 : index
    %91 = vector.load %arg4[%c3, %c0_33, %c0_34, %c0_35] : memref<4x2x16x16xf32, #tpu.memory_space<vmem>>, vector<1x2x16x16xf32>
    %92 = vector.shape_cast %91 : vector<1x2x16x16xf32> to vector<2x16x16xf32>
    %93 = vector.shape_cast %90 : vector<2x16x16xf32> to vector<1x2x16x16xf32>
    tpu.vector_store %arg4[%c3, %c0_33, %c0_34, %c0_35], %93 {strides = array<i32>} : memref<4x2x16x16xf32, #tpu.memory_space<vmem>>, vector<1x2x16x16xf32>,
    return
  }
  func.func @transform_0(%arg0: i32) -> (i32, i32) {
    %c0_i32 = arith.constant 0 : i32
    %c0_i32_0 = arith.constant 0 : i32
    %c0_i32_1 = arith.constant 0 : i32
    return %c0_i32, %c0_i32_0 : i32, i32
  }
  func.func @transform_1(%arg0: i32) -> (i32, i32) {
    %c0_i32 = arith.constant 0 : i32
    %c0_i32_0 = arith.constant 0 : i32
    %c0_i32_1 = arith.constant 0 : i32
    return %c0_i32, %c0_i32_0 : i32, i32
  }
  func.func @transform_2(%arg0: i32) -> (i32, i32, i32) {
    %c0_i32 = arith.constant 0 : i32
    %c0_i32_0 = arith.constant 0 : i32
    %c0_i32_1 = arith.constant 0 : i32
    %c0_i32_2 = arith.constant 0 : i32
    return %c0_i32, %c0_i32_0, %c0_i32_1 : i32, i32, i32
  }
  func.func @transform_3(%arg0: i32) -> (i32, i32, i32, i32) {
    %c0_i32 = arith.constant 0 : i32
    %c0_i32_0 = arith.constant 0 : i32
    %c0_i32_1 = arith.constant 0 : i32
    %c0_i32_2 = arith.constant 0 : i32
    %c0_i32_3 = arith.constant 0 : i32
    return %c0_i32, %c0_i32_0, %c0_i32_1, %c0_i32_2 : i32, i32, i32, i32
  }
}

</mosaic_0001>

<llo_original>
// kernel: tpu_custom_call.1
$region0: #{tpu_custom_call.1}
  #allocation0 [shape = 'u32[]', space=smem, size = 0x4, offset = 0x4, fixed_abs, tag = 'smem constant byte address 0x4 - core index']
  #allocation1 [shape = 'u32[72,128]{1,0:T(1,128)}', space=vmem, size = 0x9000, scoped, tag = 'internal scratch']
  %s0 = inlined_call_operand.hbm [shape: f32[32,32], index: 0, kind: input, shape index: {}]
  %s1 = inlined_call_operand.hbm [shape: f32[32,64], index: 1, kind: input, shape index: {}]
  %s2 = inlined_call_operand.hbm [shape: f32[2,16,16], index: 2, kind: input, shape index: {}]
  %s3 = inlined_call_operand.hbm [shape: f32[4,2,16,16], index: 3, kind: output, shape index: {}]
  %s4 = sld [smem:[#allocation0]]
  $region34: #{tpu_custom_call.1} parent=0
    _
  %s6 = ssub.s32 1, %s4
  %s7 = scalar_select 0, %s6, %s4
  $region1: #{tpu_custom_call.1} parent=0
    #allocation2 [shape = 'u8[16384]{0}', space=vmem, size = 0x4000, scoped, tag = 'input window, operand 0, single buffered']
    #allocation3 [shape = 's32[1]{0}', space=sflag, size = 0x4, scoped, tag = 'scoped memory for tpu_custom_call.1']
    #allocation4 [shape = 's32[1]{0}', space=sflag, size = 0x4, scoped, tag = 'scoped memory for tpu_custom_call.1']
    #allocation5 [shape = 'u8[16384]{0}', space=vmem, size = 0x4000, scoped, tag = 'input window, operand 1, single buffered']
    #allocation6 [shape = 's32[1]{0}', space=sflag, size = 0x4, scoped, tag = 'scoped memory for tpu_custom_call.1']
    #allocation7 [shape = 'u8[16384]{0}', space=vmem, size = 0x4000, scoped, tag = 'input window, operand 2, single buffered']
    #allocation8 [shape = 'u8[65536]{0}', space=vmem, size = 0x10000, scoped, tag = 'output window, operand 0, single buffered']
    %8 = vsyncpa [#allocation3], 0
    %9 = vsyncpa [#allocation6], 0
    %10 = vsyncpa [#allocation4], 0
    // Predicated region
    $region2: #{tpu_custom_call.1} parent=1 // pred_check
      _
    $region3: #{tpu_custom_call.1} parent=1 // pred_check_branch
      %12 = sbr.rel (0) target = $region5
    $region4: #{tpu_custom_call.1} parent=1 // pred_region
      %14 = vsyncadd [#allocation3], 0
      %s15 = sshll.u32 %s0, 4
      %s16 = int_to_ptr.hbm [resolvable:$true] %s15
      %s17 = sshll.u32 [#allocation2], 4
      %s18 = int_to_ptr.vmem [resolvable:$true] %s17
      %23 = dma.hbm_to_vmem [thread:$0]  %s16, 512, %s18, [#allocation3], 128, 128, 8
    $region5: #{tpu_custom_call.1} parent=1 // pred_fallthru
      _
    // Predicated region
    $region6: #{tpu_custom_call.1} parent=1 // pred_check
      _
    $region7: #{tpu_custom_call.1} parent=1 // pred_check_branch
      %25 = sbr.rel (0) target = $region9
    $region8: #{tpu_custom_call.1} parent=1 // pred_region
      %27 = vsyncadd [#allocation6], 0
      %s28 = sshll.u32 %s1, 4
      %s29 = int_to_ptr.hbm [resolvable:$true] %s28
      %s30 = sshll.u32 [#allocation5], 4
      %s31 = int_to_ptr.vmem [resolvable:$true] %s30
      %36 = dma.hbm_to_vmem [thread:$0]  %s29, 512, %s31, [#allocation6], 128, 128, 8
    $region9: #{tpu_custom_call.1} parent=1 // pred_fallthru
      _
    // Predicated region
    $region10: #{tpu_custom_call.1} parent=1 // pred_check
      _
    $region11: #{tpu_custom_call.1} parent=1 // pred_check_branch
      %38 = sbr.rel (0) target = $region13
    $region12: #{tpu_custom_call.1} parent=1 // pred_region
      %40 = vsyncadd [#allocation6], 0
      %s41 = sshll.u32 %s2, 4
      %s42 = int_to_ptr.hbm [resolvable:$true] %s41
      %s43 = sshll.u32 [#allocation7], 4
      %s44 = int_to_ptr.vmem [resolvable:$true] %s43
      %49 = dma.hbm_to_vmem [thread:$0]  %s42, 512, %s44, [#allocation6], 128, 128, 8
    $region13: #{tpu_custom_call.1} parent=1 // pred_fallthru
      _
    // Predicated region
    $region14: #{tpu_custom_call.1} parent=1 // pred_check
      _
    $region15: #{tpu_custom_call.1} parent=1 // pred_check_branch
      %51 = sbr.rel (0) target = $region17
    $region16: #{tpu_custom_call.1} parent=1 // pred_region
      %53 = dma.done [#allocation3], 512
    $region17: #{tpu_custom_call.1} parent=1 // pred_fallthru
      _
    // Predicated region
    $region18: #{tpu_custom_call.1} parent=1 // pred_check
      _
    $region19: #{tpu_custom_call.1} parent=1 // pred_check_branch
      %55 = sbr.rel (0) target = $region21
    $region20: #{tpu_custom_call.1} parent=1 // pred_region
      %57 = dma.done [#allocation6], 512
    $region21: #{tpu_custom_call.1} parent=1 // pred_fallthru
      _
    // Predicated region
    $region22: #{tpu_custom_call.1} parent=1 // pred_check
      _
    $region23: #{tpu_custom_call.1} parent=1 // pred_check_branch
      %59 = sbr.rel (0) target = $region25
    $region24: #{tpu_custom_call.1} parent=1 // pred_region
      %61 = dma.done [#allocation6], 512
    $region25: #{tpu_custom_call.1} parent=1 // pred_fallthru
      _
    %v62 = vld [vmem:[#allocation2] sm:$0xff]
    %v63 = vld [vmem:[#allocation2 + $0x8] sm:$0xff]
    %v64 = vld [vmem:[#allocation2 + $0x10] sm:$0xff]
    %v65 = vld [vmem:[#allocation2 + $0x18] sm:$0xff]
    %v66 = vld [vmem:[#allocation5] sm:$0xff]
    %v67 = vld [vmem:[#allocation5 + $0x8] sm:$0xff]
    %v68 = vld [vmem:[#allocation5 + $0x10] sm:$0xff]
    %v69 = vld [vmem:[#allocation5 + $0x18] sm:$0xff]
    %vm70 = vcmask 261120
    %v72 = vsel %vm70, %v62, 0
    %v75 = vsel %vm70, %v63, 0
    %v78 = vsel %vm70, %v64, 0
    %v81 = vsel %vm70, %v65, 0
    %83 = vmatpush.msra.mxu0 0.0
    %84 = vmatpush.msra.mxu0 0.0
    %85 = vmatpush.msra.mxu0 0.0
    %86 = vmatpush.msra.mxu0 0.0
    %87 = vmatpush.msra.mxu0 0.0
    %88 = vmatpush.msra.mxu0 0.0
    %89 = vmatpush.msra.mxu0 0.0
    %90 = vmatpush.msra.mxu0 0.0
    %91 = vmatpush.msra.mxu0 0.0
    %92 = vmatpush.msra.mxu0 0.0
    %93 = vmatpush.msra.mxu0 0.0
    %94 = vmatpush.msra.mxu0 0.0
    %95 = vmatpush.msra.mxu0 %v69
    %96 = vmatpush.msra.mxu0 %v68
    %97 = vmatpush.msra.mxu0 %v67
    %98 = vmatpush.msra.mxu0 %v66
    %99 = vmatmul.f32.gmra.mxu0 %v72
    %v100 = vpop.f32.mrf.mxu0
    %v101 = vadd.f32 0.0, %v100
    %102 = vmatmul.f32.gmra.mxu0 %v75
    %v103 = vpop.f32.mrf.mxu0
    %v104 = vadd.f32 0.0, %v103
    %105 = vmatmul.f32.gmra.mxu0 %v78
    %v106 = vpop.f32.mrf.mxu0
    %v107 = vadd.f32 0.0, %v106
    %108 = vmatmul.f32.gmra.mxu0 %v81
    %v109 = vpop.f32.mrf.mxu0
    %v110 = vadd.f32 0.0, %v109
    %111 = vdwg.mxu0
    %v112 = vmul.f32 %v101, 0.35355338
    %v113 = vmul.f32 %v104, 0.35355338
    %v114 = vmul.f32 %v107, 0.35355338
    %v115 = vmul.f32 %v110, 0.35355338
    %v116 = vld [vmem:[#allocation7] sm:$0xff]
    %v117 = vld [vmem:[#allocation7 + $0x8] sm:$0xff]
    %v118 = vld [vmem:[#allocation7 + $0x10] sm:$0xff]
    %v119 = vld [vmem:[#allocation7 + $0x18] sm:$0xff]
    %122 = vrot.lane.b32.xlu0 %v101, 96
    %v123 = vpop.permute.xlu0 %122
    %124 = vrot.lane.b32.xlu0 %v104, 96
    %v125 = vpop.permute.xlu0 %124
    %vm126 = vcmask 64512
    %v128 = vsel %vm126, %v112, 0
    %v131 = vsel %vm126, %v113, 0
    %v133 = vsel %vm126, %v123, 0
    %v135 = vsel %vm126, %v125, 0
    %137 = vmatpush.xpose.msra.mxu0 0.0
    %138 = vmatpush.xpose.msra.mxu0 0.0
    %139 = vmatpush.xpose.msra.mxu0 0.0
    %140 = vmatpush.xpose.msra.mxu0 0.0
    %141 = vmatpush.xpose.msra.mxu0 0.0
    %142 = vmatpush.xpose.msra.mxu0 0.0
    %143 = vmatpush.xpose.msra.mxu0 0.0
    %144 = vmatpush.xpose.msra.mxu0 0.0
    %145 = vmatpush.xpose.msra.mxu0 0.0
    %146 = vmatpush.xpose.msra.mxu0 0.0
    %147 = vmatpush.xpose.msra.mxu0 0.0
    %148 = vmatpush.xpose.msra.mxu0 0.0
    %149 = vmatpush.xpose.msra.mxu0 0.0
    %150 = vmatpush.xpose.msra.mxu0 0.0
    %151 = vmatpush.xpose.msra.mxu0 %v135
    %152 = vmatpush.xpose.msra.mxu0 %v133
    %153 = vmatmul.f32.gmra.mxu0 %v128
    %v154 = vpop.f32.mrf.mxu0
    %v155 = vadd.f32 %v116, %v154
    %156 = vmatmul.f32.gmra.mxu0 %v131
    %v157 = vpop.f32.mrf.mxu0
    %v158 = vadd.f32 %v117, %v157
    %159 = vdwg.mxu0
    %162 = vrot.lane.b32.xlu0 %v107, 96
    %v163 = vpop.permute.xlu0 %162
    %164 = vrot.lane.b32.xlu0 %v110, 96
    %v165 = vpop.permute.xlu0 %164
    %v167 = vsel %vm126, %v114, 0
    %v170 = vsel %vm126, %v115, 0
    %v172 = vsel %vm126, %v163, 0
    %v174 = vsel %vm126, %v165, 0
    %176 = vmatpush.xpose.msra.mxu0 0.0
    %177 = vmatpush.xpose.msra.mxu0 0.0
    %178 = vmatpush.xpose.msra.mxu0 0.0
    %179 = vmatpush.xpose.msra.mxu0 0.0
    %180 = vmatpush.xpose.msra.mxu0 0.0
    %181 = vmatpush.xpose.msra.mxu0 0.0
    %182 = vmatpush.xpose.msra.mxu0 0.0
    %183 = vmatpush.xpose.msra.mxu0 0.0
    %184 = vmatpush.xpose.msra.mxu0 0.0
    %185 = vmatpush.xpose.msra.mxu0 0.0
    %186 = vmatpush.xpose.msra.mxu0 0.0
    %187 = vmatpush.xpose.msra.mxu0 0.0
    %188 = vmatpush.xpose.msra.mxu0 0.0
    %189 = vmatpush.xpose.msra.mxu0 0.0
    %190 = vmatpush.xpose.msra.mxu0 %v174
    %191 = vmatpush.xpose.msra.mxu0 %v172
    %192 = vmatmul.f32.gmra.mxu0 %v167
    %v193 = vpop.f32.mrf.mxu0
    %v194 = vadd.f32 %v118, %v193
    %195 = vmatmul.f32.gmra.mxu0 %v170
    %v196 = vpop.f32.mrf.mxu0
    %v197 = vadd.f32 %v119, %v196
    %198 = vdwg.mxu0
    %vm199 = vcmask 130048
    %v200 = vsel %vm199, %v155, -inf
    %201 = vmax.xlane.f32.xlu0 %v200
    %v202 = vpop.xlane.xlu0 %201
    %v203 = vsel %vm199, %v158, -inf
    %204 = vmax.xlane.f32.xlu0 %v203
    %v205 = vpop.xlane.xlu0 %204
    %v206 = vsel %vm199, %v194, -inf
    %207 = vmax.xlane.f32.xlu0 %v206
    %v208 = vpop.xlane.xlu0 %207
    %v209 = vsel %vm199, %v197, -inf
    %210 = vmax.xlane.f32.xlu0 %v209
    %v211 = vpop.xlane.xlu0 %210
    %v212 = vsub.f32 %v155, %v202
    %v213 = vsub.f32 %v158, %v205
    %v214 = vsub.f32 %v194, %v208
    %v215 = vsub.f32 %v197, %v211
    %v216 = vmul.f32 %v212, 1.442695
    %v217 = vpow.pop %v216
    %v218 = vmul.f32 %v213, 1.442695
    %v219 = vpow.pop %v218
    %v220 = vmul.f32 %v214, 1.442695
    %v221 = vpow.pop %v220
    %v222 = vmul.f32 %v215, 1.442695
    %v223 = vpow.pop %v222
    %v224 = vsel %vm199, %v217, 0.0
    %225 = vadd.xlane.f32.xlu0 %v224
    %v226 = vpop.xlane.xlu0 %225
    %v227 = vsel %vm199, %v219, 0.0
    %228 = vadd.xlane.f32.xlu0 %v227
    %v229 = vpop.xlane.xlu0 %228
    %v230 = vsel %vm199, %v221, 0.0
    %231 = vadd.xlane.f32.xlu0 %v230
    %v232 = vpop.xlane.xlu0 %231
    %v233 = vsel %vm199, %v223, 0.0
    %234 = vadd.xlane.f32.xlu0 %v233
    %v235 = vpop.xlane.xlu0 %234
    %v236 = vrcp.pop %v226
    %v237 = vrcp.pop %v229
    %v238 = vrcp.pop %v232
    %v239 = vrcp.pop %v235
    %v240 = vmul.f32 %v226, %v236
    %v241 = vmul.f32 %v229, %v237
    %v242 = vmul.f32 %v232, %v238
    %v243 = vmul.f32 %v235, %v239
    %v244 = vsub.f32 2.0, %v240
    %v245 = vsub.f32 2.0, %v241
    %v246 = vsub.f32 2.0, %v242
    %v247 = vsub.f32 2.0, %v243
    %v248 = vmul.f32 %v236, %v244
    %v249 = vmul.f32 %v237, %v245
    %v250 = vmul.f32 %v238, %v246
    %v251 = vmul.f32 %v239, %v247
    %v252 = vmul.f32 %v217, %v248
    %v253 = vmul.f32 %v219, %v249
    %v254 = vmul.f32 %v221, %v250
    %v255 = vmul.f32 %v223, %v251
    %256 = vst.msk [vmem:[#allocation8] sm:$0xff] %vm199, %v252
    %257 = vst.msk [vmem:[#allocation8 + $0x8] sm:$0xff] %vm199, %v253
    %258 = vst.msk [vmem:[#allocation8 + $0x10] sm:$0xff] %vm199, %v254
    %259 = vst.msk [vmem:[#allocation8 + $0x18] sm:$0xff] %vm199, %v255
    %260 = vrot.lane.b32.xlu0 %v112, 120
    %v261 = vpop.permute.xlu0 %260
    %262 = vrot.lane.b32.xlu0 %v113, 120
    %v263 = vpop.permute.xlu0 %262
    %264 = vrot.lane.b32.xlu0 %v101, 88
    %v265 = vpop.permute.xlu0 %264
    %266 = vrot.lane.b32.xlu0 %v104, 88
    %v267 = vpop.permute.xlu0 %266
    %v268 = vsel %vm126, %v261, 0
    %v270 = vsel %vm126, %v263, 0
    %v272 = vsel %vm126, %v265, 0
    %v274 = vsel %vm126, %v267, 0
    %276 = vmatpush.xpose.msra.mxu0 0.0
    %277 = vmatpush.xpose.msra.mxu0 0.0
    %278 = vmatpush.xpose.msra.mxu0 0.0
    %279 = vmatpush.xpose.msra.mxu0 0.0
    %280 = vmatpush.xpose.msra.mxu0 0.0
    %281 = vmatpush.xpose.msra.mxu0 0.0
    %282 = vmatpush.xpose.msra.mxu0 0.0
    %283 = vmatpush.xpose.msra.mxu0 0.0
    %284 = vmatpush.xpose.msra.mxu0 0.0
    %285 = vmatpush.xpose.msra.mxu0 0.0
    %286 = vmatpush.xpose.msra.mxu0 0.0
    %287 = vmatpush.xpose.msra.mxu0 0.0
    %288 = vmatpush.xpose.msra.mxu0 0.0
    %289 = vmatpush.xpose.msra.mxu0 0.0
    %290 = vmatpush.xpose.msra.mxu0 %v274
    %291 = vmatpush.xpose.msra.mxu0 %v272
    %292 = vmatmul.f32.gmra.mxu0 %v268
    %v293 = vpop.f32.mrf.mxu0
    %v294 = vadd.f32 %v116, %v293
    %295 = vmatmul.f32.gmra.mxu0 %v270
    %v296 = vpop.f32.mrf.mxu0
    %v297 = vadd.f32 %v117, %v296
    %298 = vdwg.mxu0
    %299 = vrot.lane.b32.xlu0 %v114, 120
    %v300 = vpop.permute.xlu0 %299
    %301 = vrot.lane.b32.xlu0 %v115, 120
    %v302 = vpop.permute.xlu0 %301
    %303 = vrot.lane.b32.xlu0 %v107, 88
    %v304 = vpop.permute.xlu0 %303
    %305 = vrot.lane.b32.xlu0 %v110, 88
    %v306 = vpop.permute.xlu0 %305
    %v307 = vsel %vm126, %v300, 0
    %v309 = vsel %vm126, %v302, 0
    %v311 = vsel %vm126, %v304, 0
    %v313 = vsel %vm126, %v306, 0
    %315 = vmatpush.xpose.msra.mxu0 0.0
    %316 = vmatpush.xpose.msra.mxu0 0.0
    %317 = vmatpush.xpose.msra.mxu0 0.0
    %318 = vmatpush.xpose.msra.mxu0 0.0
    %319 = vmatpush.xpose.msra.mxu0 0.0
    %320 = vmatpush.xpose.msra.mxu0 0.0
    %321 = vmatpush.xpose.msra.mxu0 0.0
    %322 = vmatpush.xpose.msra.mxu0 0.0
    %323 = vmatpush.xpose.msra.mxu0 0.0
    %324 = vmatpush.xpose.msra.mxu0 0.0
    %325 = vmatpush.xpose.msra.mxu0 0.0
    %326 = vmatpush.xpose.msra.mxu0 0.0
    %327 = vmatpush.xpose.msra.mxu0 0.0
    %328 = vmatpush.xpose.msra.mxu0 0.0
    %329 = vmatpush.xpose.msra.mxu0 %v313
    %330 = vmatpush.xpose.msra.mxu0 %v311
    %331 = vmatmul.f32.gmra.mxu0 %v307
    %v332 = vpop.f32.mrf.mxu0
    %v333 = vadd.f32 %v118, %v332
    %334 = vmatmul.f32.gmra.mxu0 %v309
    %v335 = vpop.f32.mrf.mxu0
    %v336 = vadd.f32 %v119, %v335
    %337 = vdwg.mxu0
    %v338 = vsel %vm199, %v294, -inf
    %339 = vmax.xlane.f32.xlu0 %v338
    %v340 = vpop.xlane.xlu0 %339
    %v341 = vsel %vm199, %v297, -inf
    %342 = vmax.xlane.f32.xlu0 %v341
    %v343 = vpop.xlane.xlu0 %342
    %v344 = vsel %vm199, %v333, -inf
    %345 = vmax.xlane.f32.xlu0 %v344
    %v346 = vpop.xlane.xlu0 %345
    %v347 = vsel %vm199, %v336, -inf
    %348 = vmax.xlane.f32.xlu0 %v347
    %v349 = vpop.xlane.xlu0 %348
    %v350 = vsub.f32 %v294, %v340
    %v351 = vsub.f32 %v297, %v343
    %v352 = vsub.f32 %v333, %v346
    %v353 = vsub.f32 %v336, %v349
    %v354 = vmul.f32 %v350, 1.442695
    %v355 = vpow.pop %v354
    %v356 = vmul.f32 %v351, 1.442695
    %v357 = vpow.pop %v356
    %v358 = vmul.f32 %v352, 1.442695
    %v359 = vpow.pop %v358
    %v360 = vmul.f32 %v353, 1.442695
    %v361 = vpow.pop %v360
    %v362 = vsel %vm199, %v355, 0.0
    %363 = vadd.xlane.f32.xlu0 %v362
    %v364 = vpop.xlane.xlu0 %363
    %v365 = vsel %vm199, %v357, 0.0
    %366 = vadd.xlane.f32.xlu0 %v365
    %v367 = vpop.xlane.xlu0 %366
    %v368 = vsel %vm199, %v359, 0.0
    %369 = vadd.xlane.f32.xlu0 %v368
    %v370 = vpop.xlane.xlu0 %369
    %v371 = vsel %vm199, %v361, 0.0
    %372 = vadd.xlane.f32.xlu0 %v371
    %v373 = vpop.xlane.xlu0 %372
    %v374 = vrcp.pop %v364
    %v375 = vrcp.pop %v367
    %v376 = vrcp.pop %v370
    %v377 = vrcp.pop %v373
    %v378 = vmul.f32 %v364, %v374
    %v379 = vmul.f32 %v367, %v375
    %v380 = vmul.f32 %v370, %v376
    %v381 = vmul.f32 %v373, %v377
    %v382 = vsub.f32 2.0, %v378
    %v383 = vsub.f32 2.0, %v379
    %v384 = vsub.f32 2.0, %v380
    %v385 = vsub.f32 2.0, %v381
    %v386 = vmul.f32 %v374, %v382
    %v387 = vmul.f32 %v375, %v383
    %v388 = vmul.f32 %v376, %v384
    %v389 = vmul.f32 %v377, %v385
    %v390 = vmul.f32 %v355, %v386
    %v391 = vmul.f32 %v357, %v387
    %v392 = vmul.f32 %v359, %v388
    %v393 = vmul.f32 %v361, %v389
    %s394 = scalar_lea.vmem [#allocation8], 32
    %395 = vst.msk [vmem:[%s394] sm:$0xff] %vm199, %v390
    %396 = vst.msk [vmem:[%s394 + $0x8] sm:$0xff] %vm199, %v391
    %397 = vst.msk [vmem:[%s394 + $0x10] sm:$0xff] %vm199, %v392
    %398 = vst.msk [vmem:[%s394 + $0x18] sm:$0xff] %vm199, %v393
    %399 = vrot.lane.b32.xlu0 %v112, 112
    %v400 = vpop.permute.xlu0 %399
    %401 = vrot.lane.b32.xlu0 %v113, 112
    %v402 = vpop.permute.xlu0 %401
    %403 = vrot.lane.b32.xlu0 %v101, 80
    %v404 = vpop.permute.xlu0 %403
    %405 = vrot.lane.b32.xlu0 %v104, 80
    %v406 = vpop.permute.xlu0 %405
    %v407 = vsel %vm126, %v400, 0
    %v409 = vsel %vm126, %v402, 0
    %v411 = vsel %vm126, %v404, 0
    %v413 = vsel %vm126, %v406, 0
    %415 = vmatpush.xpose.msra.mxu0 0.0
    %416 = vmatpush.xpose.msra.mxu0 0.0
    %417 = vmatpush.xpose.msra.mxu0 0.0
    %418 = vmatpush.xpose.msra.mxu0 0.0
    %419 = vmatpush.xpose.msra.mxu0 0.0
    %420 = vmatpush.xpose.msra.mxu0 0.0
    %421 = vmatpush.xpose.msra.mxu0 0.0
    %422 = vmatpush.xpose.msra.mxu0 0.0
    %423 = vmatpush.xpose.msra.mxu0 0.0
    %424 = vmatpush.xpose.msra.mxu0 0.0
    %425 = vmatpush.xpose.msra.mxu0 0.0
    %426 = vmatpush.xpose.msra.mxu0 0.0
    %427 = vmatpush.xpose.msra.mxu0 0.0
    %428 = vmatpush.xpose.msra.mxu0 0.0
    %429 = vmatpush.xpose.msra.mxu0 %v413
    %430 = vmatpush.xpose.msra.mxu0 %v411
    %431 = vmatmul.f32.gmra.mxu0 %v407
    %v432 = vpop.f32.mrf.mxu0
    %v433 = vadd.f32 %v116, %v432
    %434 = vmatmul.f32.gmra.mxu0 %v409
    %v435 = vpop.f32.mrf.mxu0
    %v436 = vadd.f32 %v117, %v435
    %437 = vdwg.mxu0
    %438 = vrot.lane.b32.xlu0 %v114, 112
    %v439 = vpop.permute.xlu0 %438
    %440 = vrot.lane.b32.xlu0 %v115, 112
    %v441 = vpop.permute.xlu0 %440
    %442 = vrot.lane.b32.xlu0 %v107, 80
    %v443 = vpop.permute.xlu0 %442
    %444 = vrot.lane.b32.xlu0 %v110, 80
    %v445 = vpop.permute.xlu0 %444
    %v446 = vsel %vm126, %v439, 0
    %v448 = vsel %vm126, %v441, 0
    %v450 = vsel %vm126, %v443, 0
    %v452 = vsel %vm126, %v445, 0
    %454 = vmatpush.xpose.msra.mxu0 0.0
    %455 = vmatpush.xpose.msra.mxu0 0.0
    %456 = vmatpush.xpose.msra.mxu0 0.0
    %457 = vmatpush.xpose.msra.mxu0 0.0
    %458 = vmatpush.xpose.msra.mxu0 0.0
    %459 = vmatpush.xpose.msra.mxu0 0.0
    %460 = vmatpush.xpose.msra.mxu0 0.0
    %461 = vmatpush.xpose.msra.mxu0 0.0
    %462 = vmatpush.xpose.msra.mxu0 0.0
    %463 = vmatpush.xpose.msra.mxu0 0.0
    %464 = vmatpush.xpose.msra.mxu0 0.0
    %465 = vmatpush.xpose.msra.mxu0 0.0
    %466 = vmatpush.xpose.msra.mxu0 0.0
    %467 = vmatpush.xpose.msra.mxu0 0.0
    %468 = vmatpush.xpose.msra.mxu0 %v452
    %469 = vmatpush.xpose.msra.mxu0 %v450
    %470 = vmatmul.f32.gmra.mxu0 %v446
    %v471 = vpop.f32.mrf.mxu0
    %v472 = vadd.f32 %v118, %v471
    %473 = vmatmul.f32.gmra.mxu0 %v448
    %v474 = vpop.f32.mrf.mxu0
    %v475 = vadd.f32 %v119, %v474
    %476 = vdwg.mxu0
    %v477 = vsel %vm199, %v433, -inf
    %478 = vmax.xlane.f32.xlu0 %v477
    %v479 = vpop.xlane.xlu0 %478
    %v480 = vsel %vm199, %v436, -inf
    %481 = vmax.xlane.f32.xlu0 %v480
    %v482 = vpop.xlane.xlu0 %481
    %v483 = vsel %vm199, %v472, -inf
    %484 = vmax.xlane.f32.xlu0 %v483
    %v485 = vpop.xlane.xlu0 %484
    %v486 = vsel %vm199, %v475, -inf
    %487 = vmax.xlane.f32.xlu0 %v486
    %v488 = vpop.xlane.xlu0 %487
    %v489 = vsub.f32 %v433, %v479
    %v490 = vsub.f32 %v436, %v482
    %v491 = vsub.f32 %v472, %v485
    %v492 = vsub.f32 %v475, %v488
    %v493 = vmul.f32 %v489, 1.442695
    %v494 = vpow.pop %v493
    %v495 = vmul.f32 %v490, 1.442695
    %v496 = vpow.pop %v495
    %v497 = vmul.f32 %v491, 1.442695
    %v498 = vpow.pop %v497
    %v499 = vmul.f32 %v492, 1.442695
    %v500 = vpow.pop %v499
    %v501 = vsel %vm199, %v494, 0.0
    %502 = vadd.xlane.f32.xlu0 %v501
    %v503 = vpop.xlane.xlu0 %502
    %v504 = vsel %vm199, %v496, 0.0
    %505 = vadd.xlane.f32.xlu0 %v504
    %v506 = vpop.xlane.xlu0 %505
    %v507 = vsel %vm199, %v498, 0.0
    %508 = vadd.xlane.f32.xlu0 %v507
    %v509 = vpop.xlane.xlu0 %508
    %v510 = vsel %vm199, %v500, 0.0
    %511 = vadd.xlane.f32.xlu0 %v510
    %v512 = vpop.xlane.xlu0 %511
    %v513 = vrcp.pop %v503
    %v514 = vrcp.pop %v506
    %v515 = vrcp.pop %v509
    %v516 = vrcp.pop %v512
    %v517 = vmul.f32 %v503, %v513
    %v518 = vmul.f32 %v506, %v514
    %v519 = vmul.f32 %v509, %v515
    %v520 = vmul.f32 %v512, %v516
    %v521 = vsub.f32 2.0, %v517
    %v522 = vsub.f32 2.0, %v518
    %v523 = vsub.f32 2.0, %v519
    %v524 = vsub.f32 2.0, %v520
    %v525 = vmul.f32 %v513, %v521
    %v526 = vmul.f32 %v514, %v522
    %v527 = vmul.f32 %v515, %v523
    %v528 = vmul.f32 %v516, %v524
    %v529 = vmul.f32 %v494, %v525
    %v530 = vmul.f32 %v496, %v526
    %v531 = vmul.f32 %v498, %v527
    %v532 = vmul.f32 %v500, %v528
    %s533 = scalar_lea.vmem [#allocation8], 64
    %534 = vst.msk [vmem:[%s533] sm:$0xff] %vm199, %v529
    %535 = vst.msk [vmem:[%s533 + $0x8] sm:$0xff] %vm199, %v530
    %536 = vst.msk [vmem:[%s533 + $0x10] sm:$0xff] %vm199, %v531
    %537 = vst.msk [vmem:[%s533 + $0x18] sm:$0xff] %vm199, %v532
    %538 = vrot.lane.b32.xlu0 %v112, 104
    %v539 = vpop.permute.xlu0 %538
    %540 = vrot.lane.b32.xlu0 %v113, 104
    %v541 = vpop.permute.xlu0 %540
    %542 = vrot.lane.b32.xlu0 %v101, 72
    %v543 = vpop.permute.xlu0 %542
    %544 = vrot.lane.b32.xlu0 %v104, 72
    %v545 = vpop.permute.xlu0 %544
    %v546 = vsel %vm126, %v539, 0
    %v548 = vsel %vm126, %v541, 0
    %v550 = vsel %vm126, %v543, 0
    %v552 = vsel %vm126, %v545, 0
    %554 = vmatpush.xpose.msra.mxu0 0.0
    %555 = vmatpush.xpose.msra.mxu0 0.0
    %556 = vmatpush.xpose.msra.mxu0 0.0
    %557 = vmatpush.xpose.msra.mxu0 0.0
    %558 = vmatpush.xpose.msra.mxu0 0.0
    %559 = vmatpush.xpose.msra.mxu0 0.0
    %560 = vmatpush.xpose.msra.mxu0 0.0
    %561 = vmatpush.xpose.msra.mxu0 0.0
    %562 = vmatpush.xpose.msra.mxu0 0.0
    %563 = vmatpush.xpose.msra.mxu0 0.0
    %564 = vmatpush.xpose.msra.mxu0 0.0
    %565 = vmatpush.xpose.msra.mxu0 0.0
    %566 = vmatpush.xpose.msra.mxu0 0.0
    %567 = vmatpush.xpose.msra.mxu0 0.0
    %568 = vmatpush.xpose.msra.mxu0 %v552
    %569 = vmatpush.xpose.msra.mxu0 %v550
    %570 = vmatmul.f32.gmra.mxu0 %v546
    %v571 = vpop.f32.mrf.mxu0
    %v572 = vadd.f32 %v116, %v571
    %573 = vmatmul.f32.gmra.mxu0 %v548
    %v574 = vpop.f32.mrf.mxu0
    %v575 = vadd.f32 %v117, %v574
    %576 = vdwg.mxu0
    %577 = vrot.lane.b32.xlu0 %v114, 104
    %v578 = vpop.permute.xlu0 %577
    %579 = vrot.lane.b32.xlu0 %v115, 104
    %v580 = vpop.permute.xlu0 %579
    %581 = vrot.lane.b32.xlu0 %v107, 72
    %v582 = vpop.permute.xlu0 %581
    %583 = vrot.lane.b32.xlu0 %v110, 72
    %v584 = vpop.permute.xlu0 %583
    %v585 = vsel %vm126, %v578, 0
    %v587 = vsel %vm126, %v580, 0
    %v589 = vsel %vm126, %v582, 0
    %v591 = vsel %vm126, %v584, 0
    %593 = vmatpush.xpose.msra.mxu0 0.0
    %594 = vmatpush.xpose.msra.mxu0 0.0
    %595 = vmatpush.xpose.msra.mxu0 0.0
    %596 = vmatpush.xpose.msra.mxu0 0.0
    %597 = vmatpush.xpose.msra.mxu0 0.0
    %598 = vmatpush.xpose.msra.mxu0 0.0
    %599 = vmatpush.xpose.msra.mxu0 0.0
    %600 = vmatpush.xpose.msra.mxu0 0.0
    %601 = vmatpush.xpose.msra.mxu0 0.0
    %602 = vmatpush.xpose.msra.mxu0 0.0
    %603 = vmatpush.xpose.msra.mxu0 0.0
    %604 = vmatpush.xpose.msra.mxu0 0.0
    %605 = vmatpush.xpose.msra.mxu0 0.0
    %606 = vmatpush.xpose.msra.mxu0 0.0
    %607 = vmatpush.xpose.msra.mxu0 %v591
    %608 = vmatpush.xpose.msra.mxu0 %v589
    %609 = vmatmul.f32.gmra.mxu0 %v585
    %v610 = vpop.f32.mrf.mxu0
    %v611 = vadd.f32 %v118, %v610
    %612 = vmatmul.f32.gmra.mxu0 %v587
    %v613 = vpop.f32.mrf.mxu0
    %v614 = vadd.f32 %v119, %v613
    %615 = vdwg.mxu0
    %v616 = vsel %vm199, %v572, -inf
    %617 = vmax.xlane.f32.xlu0 %v616
    %v618 = vpop.xlane.xlu0 %617
    %v619 = vsel %vm199, %v575, -inf
    %620 = vmax.xlane.f32.xlu0 %v619
    %v621 = vpop.xlane.xlu0 %620
    %v622 = vsel %vm199, %v611, -inf
    %623 = vmax.xlane.f32.xlu0 %v622
    %v624 = vpop.xlane.xlu0 %623
    %v625 = vsel %vm199, %v614, -inf
    %626 = vmax.xlane.f32.xlu0 %v625
    %v627 = vpop.xlane.xlu0 %626
    %v628 = vsub.f32 %v572, %v618
    %v629 = vsub.f32 %v575, %v621
    %v630 = vsub.f32 %v611, %v624
    %v631 = vsub.f32 %v614, %v627
    %v632 = vmul.f32 %v628, 1.442695
    %v633 = vpow.pop %v632
    %v634 = vmul.f32 %v629, 1.442695
    %v635 = vpow.pop %v634
    %v636 = vmul.f32 %v630, 1.442695
    %v637 = vpow.pop %v636
    %v638 = vmul.f32 %v631, 1.442695
    %v639 = vpow.pop %v638
    %v640 = vsel %vm199, %v633, 0.0
    %641 = vadd.xlane.f32.xlu0 %v640
    %v642 = vpop.xlane.xlu0 %641
    %v643 = vsel %vm199, %v635, 0.0
    %644 = vadd.xlane.f32.xlu0 %v643
    %v645 = vpop.xlane.xlu0 %644
    %v646 = vsel %vm199, %v637, 0.0
    %647 = vadd.xlane.f32.xlu0 %v646
    %v648 = vpop.xlane.xlu0 %647
    %v649 = vsel %vm199, %v639, 0.0
    %650 = vadd.xlane.f32.xlu0 %v649
    %v651 = vpop.xlane.xlu0 %650
    %v652 = vrcp.pop %v642
    %v653 = vrcp.pop %v645
    %v654 = vrcp.pop %v648
    %v655 = vrcp.pop %v651
    %v656 = vmul.f32 %v642, %v652
    %v657 = vmul.f32 %v645, %v653
    %v658 = vmul.f32 %v648, %v654
    %v659 = vmul.f32 %v651, %v655
    %v660 = vsub.f32 2.0, %v656
    %v661 = vsub.f32 2.0, %v657
    %v662 = vsub.f32 2.0, %v658
    %v663 = vsub.f32 2.0, %v659
    %v664 = vmul.f32 %v652, %v660
    %v665 = vmul.f32 %v653, %v661
    %v666 = vmul.f32 %v654, %v662
    %v667 = vmul.f32 %v655, %v663
    %v668 = vmul.f32 %v633, %v664
    %v669 = vmul.f32 %v635, %v665
    %v670 = vmul.f32 %v637, %v666
    %v671 = vmul.f32 %v639, %v667
    %s672 = scalar_lea.vmem [#allocation8], 96
    %673 = vst.msk [vmem:[%s672] sm:$0xff] %vm199, %v668
    %674 = vst.msk [vmem:[%s672 + $0x8] sm:$0xff] %vm199, %v669
    %675 = vst.msk [vmem:[%s672 + $0x10] sm:$0xff] %vm199, %v670
    %676 = vst.msk [vmem:[%s672 + $0x18] sm:$0xff] %vm199, %v671
    // Predicated region
    $region26: #{tpu_custom_call.1} parent=1 // pred_check
      _
    $region27: #{tpu_custom_call.1} parent=1 // pred_check_branch
      %678 = sbr.rel (0) target = $region29
    $region28: #{tpu_custom_call.1} parent=1 // pred_region
      %680 = vsyncadd [#allocation4], 0
      %s681 = sshll.u32 [#allocation8], 4
      %s682 = int_to_ptr.vmem [resolvable:$true] %s681
      %s683 = sshll.u32 %s3, 4
      %s684 = int_to_ptr.hbm [resolvable:$true] %s683
      %689 = dma.vmem_to_hbm [thread:$0]  %s682, 2048, %s684, [#allocation4], 128, 128, 8
    $region29: #{tpu_custom_call.1} parent=1 // pred_fallthru
      _
    // Predicated region
    $region30: #{tpu_custom_call.1} parent=1 // pred_check
      _
    $region31: #{tpu_custom_call.1} parent=1 // pred_check_branch
      %691 = sbr.rel (0) target = $region33
    $region32: #{tpu_custom_call.1} parent=1 // pred_region
      %693 = dma.done [#allocation4], 2048
    $region33: #{tpu_custom_call.1} parent=1 // pred_fallthru
      _
    %694 = vsyncpa [#allocation3], 1
    %695 = vsyncpa [#allocation6], 1
    %696 = vsyncpa [#allocation4], 1

</llo_original>
